<compile_context>
chip_gen: v7x
topology: tpu7x:2x2x1
jax: 0.10.0
libtpu: 0.0.40
codegen_flags: <defaults>
</compile_context>

<pallas_src>
import functools

import jax
import jax.numpy as jnp
from jax import lax
from jax.experimental import pallas as pl
from jax.experimental.pallas import tpu as pltpu


# TODO(synk): PyTorch nn.GELU()/F.gelu default is the exact erf-based GELU; lax.erf has no
# guaranteed Mosaic lowering, so we use the standard tanh approximation (|err| ~1e-3).
_SQRT_2_OVER_PI = 0.7978845608028654


def _gelu(x):
    return 0.5 * x * (1.0 + jnp.tanh(_SQRT_2_OVER_PI * (x + 0.044715 * x * x * x)))


# (M, K) x (N, K) -> (M, N): contract last dims, no transpose materialized.
_CONTRACT_LAST = (((1,), (1,)), ((), ()))

_MAX_TM = 512  # rows <= this run as a single M tile (block == full dim, always legal)


# ----------------------------------------------------------------------------- VMEM budgets
@functools.lru_cache(maxsize=None)
def _vmem_capacity():
    try:
        cap = getattr(pltpu.get_tpu_info(), "vmem_capacity_bytes", None)
        if cap:
            return int(cap)
    except Exception:
        pass
    return 64 * 1024 * 1024  # conservative fallback == v7x per-TensorCore VMEM


def _vmem_limit():
    # Scoped-VMEM limit handed to Mosaic: 3/4 of physical (96 MiB v5e/v6e, 48 MiB v7x).
    return _vmem_capacity() * 3 // 4


def _tile_budget():
    # What the tile planner may spend on double-buffered blocks; ~20% headroom is left for
    # bias buffers, semaphores and Mosaic internal scratch.
    return _vmem_limit() * 4 // 5


# ----------------------------------------------------------------------------- tile planning
def _round_up(x, m):
    return ((x + m - 1) // m) * m


def _padded_rows(rows):
    """Row count the kernels run on (idempotent); feed_forward pads once to this."""
    if rows <= _MAX_TM:
        return _round_up(rows, 8)
    return _round_up(rows, 256)


def _divisor_tiles(full, candidates):
    return [t for t in candidates if t <= full and full % t == 0]


def _plan_tiles(rows, nout, kin, esize, w_mult, budget):
    """Choose (tm, tn, tk, k_tiled).

    Prefers a 2-D grid (no K axis): one long MXU contraction per output tile, no fp32
    accumulator read-modify-write, no per-k-step overhead.  Falls back to a K-tiled
    accumulator kernel only when full-K tiles cannot fit the VMEM budget.
    """
    if rows <= _MAX_TM:
        tm_cands = [rows]
    else:  # rows is pre-padded to a multiple of 256, so these always include a divisor.
        tm_cands = _divisor_tiles(rows, (1024, 512, 256)) or [256]
    # Prefer 256-aligned N tiles (v6e/v7x MXU is 256 wide); 128 fallback; full dim last.
    tn_cands = _divisor_tiles(nout, (512, 256, 128)) or [nout]

    def nok_bytes(tm, tn):
        # double-buffered x, W (w_mult halves) and output tiles; biases negligible.
        return 2 * esize * (tm * kin + w_mult * tn * kin + tm * tn)

    for tm in tm_cands:          # large tm first: weight HBM re-streaming ~ rows/tm
        for tn in tn_cands:
            if nok_bytes(tm, tn) <= budget:
                return tm, tn, kin, False

    tk_cands = _divisor_tiles(kin, (2048, 1024, 512, 256)) or [kin]

    def k_bytes(tm, tn, tk):
        return (2 * esize * (tm * tk + w_mult * tn * tk + tm * tn)
                + 4 * w_mult * tm * tn)  # fp32 accumulator scratch

    for tm in tm_cands:
        for tn in tn_cands:
            for tk in tk_cands:
                if k_bytes(tm, tn, tk) <= budget:
                    return tm, tn, tk, True
    return tm_cands[-1], tn_cands[-1], tk_cands[-1], True


# ----------------------------------------------------------------------------- kernels
def _linear_kernel(x_ref, w_ref, b_ref, o_ref, *, activation):
    """y = act(x @ W^T + b); full-K contraction, no accumulator."""
    y = lax.dot_general(x_ref[...], w_ref[...], _CONTRACT_LAST,
                        preferred_element_type=jnp.float32)
    y = y + b_ref[...].astype(jnp.float32)
    if activation == "gelu":
        y = _gelu(y)
    o_ref[...] = y.astype(o_ref.dtype)


def _linear_kernel_ktiled(x_ref, w_ref, b_ref, o_ref, acc_ref, *, activation):
    """Fallback for very large K: K-tiled with fp32 accumulator."""
    k = pl.program_id(2)

    @pl.when(k == 0)
    def _():
        acc_ref[...] = jnp.zeros_like(acc_ref)

    acc_ref[...] += lax.dot_general(x_ref[...], w_ref[...], _CONTRACT_LAST,
                                    preferred_element_type=jnp.float32)

    @pl.when(k == pl.num_programs(2) - 1)
    def _():
        y = acc_ref[...] + b_ref[...].astype(jnp.float32)
        if activation == "gelu":
            y = _gelu(y)
        o_ref[...] = y.astype(o_ref.dtype)


def _geglu_kernel(x_ref, w_ref, b_ref, o_ref):
    """GEGLU: value & gate matmuls share the x tile; gate fused in the epilogue."""
    x = x_ref[...]
    h = lax.dot_general(x, w_ref[0], _CONTRACT_LAST, preferred_element_type=jnp.float32)
    g = lax.dot_general(x, w_ref[1], _CONTRACT_LAST, preferred_element_type=jnp.float32)
    h = h + b_ref[0].astype(jnp.float32)
    g = g + b_ref[1].astype(jnp.float32)
    o_ref[...] = (h * _gelu(g)).astype(o_ref.dtype)


def _geglu_kernel_ktiled(x_ref, w_ref, b_ref, o_ref, acc_v, acc_g):
    k = pl.program_id(2)

    @pl.when(k == 0)
    def _():
        acc_v[...] = jnp.zeros_like(acc_v)
        acc_g[...] = jnp.zeros_like(acc_g)

    x = x_ref[...]
    acc_v[...] += lax.dot_general(x, w_ref[0], _CONTRACT_LAST,
                                  preferred_element_type=jnp.float32)
    acc_g[...] += lax.dot_general(x, w_ref[1], _CONTRACT_LAST,
                                  preferred_element_type=jnp.float32)

    @pl.when(k == pl.num_programs(2) - 1)
    def _():
        h = acc_v[...] + b_ref[0].astype(jnp.float32)
        g = acc_g[...] + b_ref[1].astype(jnp.float32)
        o_ref[...] = (h * _gelu(g)).astype(o_ref.dtype)


# ----------------------------------------------------------------------------- wrappers
def linear(x2d, w, b, *, activation=None):
    """PyTorch nn.Linear (+ optional fused GELU): y = act(x @ W^T + b); W is (out, in)."""
    rows, kin = x2d.shape
    nout, kin_w = w.shape
    assert kin == kin_w
    rows_p = _padded_rows(rows)
    if rows_p != rows:
        x2d = jnp.pad(x2d, ((0, rows_p - rows), (0, 0)))

    tm, tn, tk, k_tiled = _plan_tiles(rows_p, nout, kin, x2d.dtype.itemsize, 1, _tile_budget())
    b2d = b.reshape(1, nout)
    out_shape = jax.ShapeDtypeStruct((rows_p, nout), x2d.dtype)

    if not k_tiled:
        y = pl.pallas_call(
            functools.partial(_linear_kernel, activation=activation),
            out_shape=out_shape,
            grid_spec=pltpu.PrefetchScalarGridSpec(
                num_scalar_prefetch=0,
                grid=(rows_p // tm, nout // tn),
                in_specs=[
                    pl.BlockSpec((tm, kin), lambda i, j: (i, 0)),   # x tile (full K)
                    pl.BlockSpec((tn, kin), lambda i, j: (j, 0)),   # W tile (out, in)
                    pl.BlockSpec((1, tn), lambda i, j: (0, j)),     # bias tile
                ],
                out_specs=pl.BlockSpec((tm, tn), lambda i, j: (i, j)),
            ),
            compiler_params=pltpu.CompilerParams(
                dimension_semantics=("parallel", "parallel"),
                vmem_limit_bytes=_vmem_limit(),
            ),
        )(x2d, w, b2d)
    else:
        y = pl.pallas_call(
            functools.partial(_linear_kernel_ktiled, activation=activation),
            out_shape=out_shape,
            grid_spec=pltpu.PrefetchScalarGridSpec(
                num_scalar_prefetch=0,
                grid=(rows_p // tm, nout // tn, kin // tk),
                in_specs=[
                    pl.BlockSpec((tm, tk), lambda i, j, k: (i, k)),
                    pl.BlockSpec((tn, tk), lambda i, j, k: (j, k)),
                    pl.BlockSpec((1, tn), lambda i, j, k: (0, j)),
                ],
                out_specs=pl.BlockSpec((tm, tn), lambda i, j, k: (i, j)),
                scratch_shapes=[pltpu.VMEM((tm, tn), jnp.float32)],
            ),
            compiler_params=pltpu.CompilerParams(
                dimension_semantics=("parallel", "parallel", "arbitrary"),
                vmem_limit_bytes=_vmem_limit(),
            ),
        )(x2d, w, b2d)
    return y[:rows] if rows_p != rows else y


def geglu(x2d, w, b):
    """GEGLU: [h, g] = x @ W^T + b split along the output dim; return h * gelu(g).

    W is the fused (2*inner, dim) projection; halves are addressed in place via a free
    contiguous reshape to (2, inner, dim) — no wrapper slicing copies.
    """
    rows, kin = x2d.shape
    inner = w.shape[0] // 2
    rows_p = _padded_rows(rows)
    if rows_p != rows:
        x2d = jnp.pad(x2d, ((0, rows_p - rows), (0, 0)))

    w3 = w.reshape(2, inner, kin)     # value half = [0], gate half = [1] (== .chunk(2, -1))
    b3 = b.reshape(2, 1, inner)
    tm, tn, tk, k_tiled = _plan_tiles(rows_p, inner, kin, x2d.dtype.itemsize, 2, _tile_budget())
    out_shape = jax.ShapeDtypeStruct((rows_p, inner), x2d.dtype)

    if not k_tiled:
        y = pl.pallas_call(
            _geglu_kernel,
            out_shape=out_shape,
            grid_spec=pltpu.PrefetchScalarGridSpec(
                num_scalar_prefetch=0,
                grid=(rows_p // tm, inner // tn),
                in_specs=[
                    pl.BlockSpec((tm, kin), lambda i, j: (i, 0)),       # x tile (shared)
                    pl.BlockSpec((2, tn, kin), lambda i, j: (0, j, 0)),  # both weight halves
                    pl.BlockSpec((2, 1, tn), lambda i, j: (0, 0, j)),    # both bias halves
                ],
                out_specs=pl.BlockSpec((tm, tn), lambda i, j: (i, j)),
            ),
            compiler_params=pltpu.CompilerParams(
                dimension_semantics=("parallel", "parallel"),
                vmem_limit_bytes=_vmem_limit(),
            ),
        )(x2d, w3, b3)
    else:
        y = pl.pallas_call(
            _geglu_kernel_ktiled,
            out_shape=out_shape,
            grid_spec=pltpu.PrefetchScalarGridSpec(
                num_scalar_prefetch=0,
                grid=(rows_p // tm, inner // tn, kin // tk),
                in_specs=[
                    pl.BlockSpec((tm, tk), lambda i, j, k: (i, k)),
                    pl.BlockSpec((2, tn, tk), lambda i, j, k: (0, j, k)),
                    pl.BlockSpec((2, 1, tn), lambda i, j, k: (0, 0, j)),
                ],
                out_specs=pl.BlockSpec((tm, tn), lambda i, j, k: (i, j)),
                scratch_shapes=[pltpu.VMEM((tm, tn), jnp.float32),
                                pltpu.VMEM((tm, tn), jnp.float32)],
            ),
            compiler_params=pltpu.CompilerParams(
                dimension_semantics=("parallel", "parallel", "arbitrary"),
                vmem_limit_bytes=_vmem_limit(),
            ),
        )(x2d, w3, b3)
    return y[:rows] if rows_p != rows else y


def feed_forward(x, w_in, b_in, w_out, b_out, *, glu=False):
    """FeedForward.forward: x is (B, N, dim); returns (B, N, dim_out)."""
    bsz, n, dim = x.shape
    rows = bsz * n
    rows_p = _padded_rows(rows)
    x2d = x.reshape(rows, dim)
    if rows_p != rows:  # pad rows once so both projections run on tiling-friendly shapes
        x2d = jnp.pad(x2d, ((0, rows_p - rows), (0, 0)))
    if glu:
        h = geglu(x2d, w_in, b_in)                       # fused Linear(dim, 2*inner) + gate
    else:
        h = linear(x2d, w_in, b_in, activation="gelu")   # Linear(dim, inner) + GELU fused
    # nn.Dropout(p=0.0) is the identity in the forward pass.
    # TODO(synk): storing h in bf16 (or fully fusing both matmuls) would halve the
    #             intermediate HBM traffic at a small numerical cost; kept dtype-preserving.
    y = linear(h, w_out, b_out, activation=None)          # Linear(inner, dim_out)
    return y[:rows].reshape(bsz, n, w_out.shape[0])


if __name__ == "__main__":
    key = jax.random.PRNGKey(0)
    batch, seq, dim, mult = 2, 8, 32, 4
    inner = dim * mult          # 128
    dim_out = dim               # default(dim_out, dim) -> 32

    ks = jax.random.split(key, 6)
    x = jax.random.normal(ks[0], (batch, seq, dim), jnp.float32)

    # nn.Linear weights are (out_features, in_features); both FF linears have bias.
    w_in = 0.05 * jax.random.normal(ks[1], (inner, dim), jnp.float32)
    b_in = 0.05 * jax.random.normal(ks[2], (inner,), jnp.float32)
    w_out = 0.05 * jax.random.normal(ks[3], (dim_out, inner), jnp.float32)
    b_out = 0.05 * jax.random.normal(ks[4], (dim_out,), jnp.float32)

    # --- glu=False path (default): Linear + GELU + Linear -------------------
    y = feed_forward(x, w_in, b_in, w_out, b_out, glu=False)
    jax.block_until_ready(y)
    assert y.shape == (batch, seq, dim_out)

    x2d = x.reshape(batch * seq, dim)
    h_ref = jax.nn.gelu(x2d @ w_in.T + b_in, approximate=True)
    y_ref = (h_ref @ w_out.T + b_out).reshape(batch, seq, dim_out)
    assert jnp.allclose(y, y_ref, atol=1e-4, rtol=1e-4), "glu=False mismatch"

    # --- glu=True path (GEGLU): Linear(dim, 2*inner) -> h * gelu(gate) ------
    w_geglu = 0.05 * jax.random.normal(ks[5], (2 * inner, dim), jnp.float32)
    b_geglu = jnp.linspace(-0.1, 0.1, 2 * inner, dtype=jnp.float32)
    y2 = feed_forward(x, w_geglu, b_geglu, w_out, b_out, glu=True)
    jax.block_until_ready(y2)
    assert y2.shape == (batch, seq, dim_out)

    hv = x2d @ w_geglu[:inner].T + b_geglu[:inner]
    hg = x2d @ w_geglu[inner:].T + b_geglu[inner:]
    y2_ref = ((hv * jax.nn.gelu(hg, approximate=True)) @ w_out.T + b_out)
    y2_ref = y2_ref.reshape(batch, seq, dim_out)
    assert jnp.allclose(y2, y2_ref, atol=1e-4, rtol=1e-4), "glu=True mismatch"

    # --- awkward row count exercises the padding path ------------------------
    xb = jax.random.normal(ks[0], (3, 7, dim), jnp.float32)        # rows = 21 -> padded to 24
    yb = feed_forward(xb, w_in, b_in, w_out, b_out, glu=False)
    jax.block_until_ready(yb)
    xb2d = xb.reshape(21, dim)
    yb_ref = (jax.nn.gelu(xb2d @ w_in.T + b_in, approximate=True) @ w_out.T + b_out)
    assert jnp.allclose(yb, yb_ref.reshape(3, 7, dim_out), atol=1e-4, rtol=1e-4), "padding mismatch"

    print("KERNEL_OK")
</pallas_src>

<mosaic_0001>
module attributes {stable_mosaic.version = 11 : i64} {
  func.func @_linear_kernel(%arg0: i32, %arg1: i32, %arg2: memref<16x32xf32, #tpu.memory_space<vmem>>, %arg3: memref<128x32xf32, #tpu.memory_space<vmem>>, %arg4: memref<1x128xf32, #tpu.memory_space<vmem>>, %arg5: memref<16x128xf32, #tpu.memory_space<vmem>>) attributes {dimension_semantics = [#tpu.dimension_semantics<parallel>, #tpu.dimension_semantics<parallel>], iteration_bounds = array<i64: 1, 1>, scalar_prefetch = 0 : i64, scratch_operands = 0 : i64, tpu.core_type = #tpu.core_type<tc>, window_params = [{transform_indices = @transform_0, window_bounds = array<i64: 16, 32>}, {transform_indices = @transform_1, window_bounds = array<i64: 128, 32>}, {transform_indices = @transform_2, window_bounds = array<i64: 1, 128>}, {transform_indices = @transform_3, window_bounds = array<i64: 16, 128>}]} {
    %c0 = arith.constant 0 : index
    %c0_0 = arith.constant 0 : index
    %0 = vector.load %arg2[%c0, %c0_0] : memref<16x32xf32, #tpu.memory_space<vmem>>, vector<16x32xf32>
    %c0_1 = arith.constant 0 : index
    %c0_2 = arith.constant 0 : index
    %1 = vector.load %arg3[%c0_1, %c0_2] : memref<128x32xf32, #tpu.memory_space<vmem>>, vector<128x32xf32>
    %cst = arith.constant dense<0.000000e+00> : vector<16x128xf32>
    %2 = tpu.matmul %0, %1, %cst {dimension_numbers = #tpu.dot_dimension_numbers<[1], [1], [0], [0], [0, 0, 1, 0], [], []>} : vector<16x32xf32>, vector<128x32xf32>, vector<16x128xf32> -> vector<16x128xf32>
    %c0_3 = arith.constant 0 : index
    %c0_4 = arith.constant 0 : index
    %3 = vector.load %arg4[%c0_3, %c0_4] : memref<1x128xf32, #tpu.memory_space<vmem>>, vector<1x128xf32>
    %4 = vector.broadcast %3 : vector<1x128xf32> to vector<16x128xf32>
    %5 = arith.addf %2, %4 : vector<16x128xf32>
    %cst_5 = arith.constant 5.000000e-01 : f32
    %6 = vector.broadcast %cst_5 : f32 to vector<16x128xf32>
    %7 = arith.mulf %6, %5 : vector<16x128xf32>
    %cst_6 = arith.constant 4.471500e-02 : f32
    %8 = vector.broadcast %cst_6 : f32 to vector<16x128xf32>
    %9 = arith.mulf %8, %5 : vector<16x128xf32>
    %10 = arith.mulf %9, %5 : vector<16x128xf32>
    %11 = arith.mulf %10, %5 : vector<16x128xf32>
    %12 = arith.addf %5, %11 : vector<16x128xf32>
    %cst_7 = arith.constant 0.797884583 : f32
    %13 = vector.broadcast %cst_7 : f32 to vector<16x128xf32>
    %14 = arith.mulf %13, %12 : vector<16x128xf32>
    %15 = math.tanh %14 : vector<16x128xf32>
    %cst_8 = arith.constant 1.000000e+00 : f32
    %16 = vector.broadcast %cst_8 : f32 to vector<16x128xf32>
    %17 = arith.addf %16, %15 : vector<16x128xf32>
    %18 = arith.mulf %7, %17 : vector<16x128xf32>
    %c0_9 = arith.constant 0 : index
    %c0_10 = arith.constant 0 : index
    %19 = vector.load %arg5[%c0_9, %c0_10] : memref<16x128xf32, #tpu.memory_space<vmem>>, vector<16x128xf32>
    tpu.vector_store %arg5[%c0_9, %c0_10], %18 {strides = array<i32>} : memref<16x128xf32, #tpu.memory_space<vmem>>, vector<16x128xf32>,
    return
  }
  func.func @transform_0(%arg0: i32, %arg1: i32) -> (i32, i32) {
    %c0_i32 = arith.constant 0 : i32
    %c0_i32_0 = arith.constant 0 : i32
    return %arg0, %c0_i32 : i32, i32
  }
  func.func @transform_1(%arg0: i32, %arg1: i32) -> (i32, i32) {
    %c0_i32 = arith.constant 0 : i32
    %c0_i32_0 = arith.constant 0 : i32
    return %arg1, %c0_i32 : i32, i32
  }
  func.func @transform_2(%arg0: i32, %arg1: i32) -> (i32, i32) {
    %c0_i32 = arith.constant 0 : i32
    %c0_i32_0 = arith.constant 0 : i32
    return %c0_i32, %arg1 : i32, i32
  }
  func.func @transform_3(%arg0: i32, %arg1: i32) -> (i32, i32) {
    %c0_i32 = arith.constant 0 : i32
    return %arg0, %arg1 : i32, i32
  }
}

</mosaic_0001>

<llo_original>
// kernel: tpu_custom_call.1
$region0: #{tpu_custom_call.1}
  #allocation0 [shape = 'u32[]', space=smem, size = 0x4, offset = 0x4, fixed_abs, tag = 'smem constant byte address 0x4 - core index']
  #allocation1 [shape = 'u32[144,128]{1,0:T(1,128)}', space=vmem, size = 0x12000, scoped, tag = 'internal scratch']
  %s0 = inlined_call_operand.vmem [shape: f32[16,32], index: 0, kind: input, shape index: {}]
  %s1 = inlined_call_operand.vmem [shape: f32[128,32], index: 1, kind: input, shape index: {}]
  %s2 = inlined_call_operand.vmem [shape: f32[1,128], index: 2, kind: input, shape index: {}]
  %s3 = inlined_call_operand.hbm [shape: f32[16,128], index: 3, kind: output, shape index: {}]
  %s4 = sld [smem:[#allocation0]]
  $region22: #{tpu_custom_call.1} parent=0
    _
  %s6 = ssub.s32 1, %s4
  %s7 = scalar_select 0, %s6, %s4
  $region1: #{tpu_custom_call.1} parent=0
    #allocation2 [shape = 'u8[8192]{0}', space=vmem, size = 0x2000, scoped, tag = 'output window, operand 0, single buffered']
    #allocation3 [shape = 's32[1]{0}', space=sflag, size = 0x4, scoped, tag = 'scoped memory for tpu_custom_call.1']
    %8 = vsyncpa [#allocation3], 0
    // Predicated region
    $region2: #{tpu_custom_call.1} parent=1 // pred_check
      _
    $region3: #{tpu_custom_call.1} parent=1 // pred_check_branch
      %10 = sbr.rel (0) target = $region5
    $region4: #{tpu_custom_call.1} parent=1 // pred_region
      _
    $region5: #{tpu_custom_call.1} parent=1 // pred_fallthru
      _
    // Predicated region
    $region6: #{tpu_custom_call.1} parent=1 // pred_check
      _
    $region7: #{tpu_custom_call.1} parent=1 // pred_check_branch
      %12 = sbr.rel (0) target = $region9
    $region8: #{tpu_custom_call.1} parent=1 // pred_region
      _
    $region9: #{tpu_custom_call.1} parent=1 // pred_fallthru
      _
    // Predicated region
    $region10: #{tpu_custom_call.1} parent=1 // pred_check
      _
    $region11: #{tpu_custom_call.1} parent=1 // pred_check_branch
      %14 = sbr.rel (0) target = $region13
    $region12: #{tpu_custom_call.1} parent=1 // pred_region
      _
    $region13: #{tpu_custom_call.1} parent=1 // pred_fallthru
      _
    %v15 = vld [vmem:[%s0] sm:$0xff]
    %v16 = vld [vmem:[%s0 + $0x8] sm:$0xff]
    %v17 = vld [vmem:[%s1] sm:$0xff]
    %v18 = vld [vmem:[%s1 + $0x8] sm:$0xff]
    %v19 = vld [vmem:[%s1 + $0x10] sm:$0xff]
    %v20 = vld [vmem:[%s1 + $0x18] sm:$0xff]
    %v21 = vld [vmem:[%s1 + $0x20] sm:$0xff]
    %v22 = vld [vmem:[%s1 + $0x28] sm:$0xff]
    %v23 = vld [vmem:[%s1 + $0x30] sm:$0xff]
    %v24 = vld [vmem:[%s1 + $0x38] sm:$0xff]
    %v25 = vld [vmem:[%s1 + $0x40] sm:$0xff]
    %v26 = vld [vmem:[%s1 + $0x48] sm:$0xff]
    %v27 = vld [vmem:[%s1 + $0x50] sm:$0xff]
    %v28 = vld [vmem:[%s1 + $0x58] sm:$0xff]
    %v29 = vld [vmem:[%s1 + $0x60] sm:$0xff]
    %v30 = vld [vmem:[%s1 + $0x68] sm:$0xff]
    %v31 = vld [vmem:[%s1 + $0x70] sm:$0xff]
    %v32 = vld [vmem:[%s1 + $0x78] sm:$0xff]
    %v33 = vld [vmem:[%s2] sm:$0x1]
    %v35 = vlaneseq
    %v36 = vshrl.u32 %v35, 7
    %v37 = vsub.s32 0, %v36
    %v38 = vrot.slane %v33, %v37
    %vm40 = vcmask 261120
    %v42 = vsel %vm40, %v15, 0
    %v45 = vsel %vm40, %v16, 0
    %v48 = vsel %vm40, %v17, 0
    %v51 = vsel %vm40, %v18, 0
    %v54 = vsel %vm40, %v19, 0
    %v57 = vsel %vm40, %v20, 0
    %v60 = vsel %vm40, %v21, 0
    %v63 = vsel %vm40, %v22, 0
    %v66 = vsel %vm40, %v23, 0
    %v69 = vsel %vm40, %v24, 0
    %v72 = vsel %vm40, %v25, 0
    %v75 = vsel %vm40, %v26, 0
    %v78 = vsel %vm40, %v27, 0
    %v81 = vsel %vm40, %v28, 0
    %v84 = vsel %vm40, %v29, 0
    %v87 = vsel %vm40, %v30, 0
    %v90 = vsel %vm40, %v31, 0
    %v93 = vsel %vm40, %v32, 0
    %95 = vmatprep.subr.mxu0 0.0
    %96 = vmatpush1.xpose.msra.mxu0 %v48
    %97 = vmatprep.subr.mxu0 0.0
    %98 = vmatpush1.xpose.msra.mxu0 %v51
    %99 = vmatprep.subr.mxu0 0.0
    %100 = vmatpush1.xpose.msra.mxu0 %v54
    %101 = vmatprep.subr.mxu0 0.0
    %102 = vmatpush1.xpose.msra.mxu0 %v57
    %103 = vmatprep.subr.mxu0 0.0
    %104 = vmatpush1.xpose.msra.mxu0 %v60
    %105 = vmatprep.subr.mxu0 0.0
    %106 = vmatpush1.xpose.msra.mxu0 %v63
    %107 = vmatprep.subr.mxu0 0.0
    %108 = vmatpush1.xpose.msra.mxu0 %v66
    %109 = vmatprep.subr.mxu0 0.0
    %110 = vmatpush1.xpose.msra.mxu0 %v69
    %111 = vmatprep.subr.mxu0 0.0
    %112 = vmatpush1.xpose.msra.mxu0 %v72
    %113 = vmatprep.subr.mxu0 0.0
    %114 = vmatpush1.xpose.msra.mxu0 %v75
    %115 = vmatprep.subr.mxu0 0.0
    %116 = vmatpush1.xpose.msra.mxu0 %v78
    %117 = vmatprep.subr.mxu0 0.0
    %118 = vmatpush1.xpose.msra.mxu0 %v81
    %119 = vmatprep.subr.mxu0 0.0
    %120 = vmatpush1.xpose.msra.mxu0 %v84
    %121 = vmatprep.subr.mxu0 0.0
    %122 = vmatpush1.xpose.msra.mxu0 %v87
    %123 = vmatprep.subr.mxu0 0.0
    %124 = vmatpush1.xpose.msra.mxu0 %v90
    %125 = vmatprep.subr.mxu0 0.0
    %126 = vmatpush1.xpose.msra.mxu0 %v93
    %127 = vmatprep.subr.mxu0 0.0
    %128 = vmatpush1.xpose.msra.mxu0 0.0
    %129 = vmatprep.subr.mxu0 0.0
    %130 = vmatpush1.xpose.msra.mxu0 0.0
    %131 = vmatprep.subr.mxu0 0.0
    %132 = vmatpush1.xpose.msra.mxu0 0.0
    %133 = vmatprep.subr.mxu0 0.0
    %134 = vmatpush1.xpose.msra.mxu0 0.0
    %135 = vmatprep.subr.mxu0 0.0
    %136 = vmatpush1.xpose.msra.mxu0 0.0
    %137 = vmatprep.subr.mxu0 0.0
    %138 = vmatpush1.xpose.msra.mxu0 0.0
    %139 = vmatprep.subr.mxu0 0.0
    %140 = vmatpush1.xpose.msra.mxu0 0.0
    %141 = vmatprep.subr.mxu0 0.0
    %142 = vmatpush1.xpose.msra.mxu0 0.0
    %143 = vmatprep.subr.mxu0 0.0
    %144 = vmatpush1.xpose.msra.mxu0 0.0
    %145 = vmatprep.subr.mxu0 0.0
    %146 = vmatpush1.xpose.msra.mxu0 0.0
    %147 = vmatprep.subr.mxu0 0.0
    %148 = vmatpush1.xpose.msra.mxu0 0.0
    %149 = vmatprep.subr.mxu0 0.0
    %150 = vmatpush1.xpose.msra.mxu0 0.0
    %151 = vmatprep.subr.mxu0 0.0
    %152 = vmatpush1.xpose.msra.mxu0 0.0
    %153 = vmatprep.subr.mxu0 0.0
    %154 = vmatpush1.xpose.msra.mxu0 0.0
    %155 = vmatprep.subr.mxu0 0.0
    %156 = vmatpush1.xpose.msra.mxu0 0.0
    %157 = vmatprep.subr.mxu0 0.0
    %158 = vmatpush1.xpose.msra.mxu0 0.0
    %159 = vmatprep.mubr.f32.mxu0 0.0
    %160 = vmatmul.mubr.f32.gmra.mrb[0].mxu0 %v42
    %v161 = vpop.f32.mrb[0].mxu0
    %v162 = vadd.f32 %v38, %v161
    %v163 = vpop.f32.mrb[0].mxu0
    %164 = vmatprep.mubr.f32.mxu0 0.0
    %165 = vmatmul.mubr.f32.gmra.mrb[0].mxu0 %v45
    %v166 = vpop.f32.mrb[0].mxu0
    %v167 = vadd.f32 %v38, %v166
    %v168 = vpop.f32.mrb[0].mxu0
    %169 = vdwg.mxu0
    %v170 = vmul.f32 %v162, 0.5
    %v171 = vmul.f32 %v167, 0.5
    %v172 = vmul.f32 %v162, 0.044715
    %v173 = vmul.f32 %v167, 0.044715
    %v174 = vmul.f32 %v172, %v162
    %v175 = vmul.f32 %v173, %v167
    %v176 = vmul.f32 %v174, %v162
    %v177 = vmul.f32 %v175, %v167
    %v178 = vadd.f32 %v162, %v176
    %v179 = vadd.f32 %v167, %v177
    %v180 = vmul.f32 %v178, 0.7978846
    %v181 = vmul.f32 %v179, 0.7978846
    %v182 = vtanh.pop %v180
    %v183 = vtanh.pop %v181
    %v184 = vadd.f32 %v182, 1.0
    %v185 = vadd.f32 %v183, 1.0
    %v186 = vmul.f32 %v170, %v184
    %v187 = vmul.f32 %v171, %v185
    %188 = vst [vmem:[#allocation2] sm:$0xff] %v186
    %189 = vst [vmem:[#allocation2 + $0x8] sm:$0xff] %v187
    // Predicated region
    $region14: #{tpu_custom_call.1} parent=1 // pred_check
      _
    $region15: #{tpu_custom_call.1} parent=1 // pred_check_branch
      %191 = sbr.rel (0) target = $region17
    $region16: #{tpu_custom_call.1} parent=1 // pred_region
      %s193 = ssub.s32 256, 256
      %194 = vsyncadd [#allocation3], %s193
      %s195 = sshll.u32 [#allocation2], 4
      %s196 = int_to_ptr.vmem [resolvable:$true] %s195
      %201 = dma.vmem_to_hbm [thread:$0]  %s196, 256, %s3, [#allocation3], 128, 128, 8
    $region17: #{tpu_custom_call.1} parent=1 // pred_fallthru
      _
    // Predicated region
    $region18: #{tpu_custom_call.1} parent=1 // pred_check
      _
    $region19: #{tpu_custom_call.1} parent=1 // pred_check_branch
      %203 = sbr.rel (0) target = $region21
    $region20: #{tpu_custom_call.1} parent=1 // pred_region
      %204 = dma.done [#allocation3], 256
    $region21: #{tpu_custom_call.1} parent=1 // pred_fallthru
      _
    %205 = vsyncpa [#allocation3], 1

</llo_original>
